<compile_context>
chip_gen: v7x
topology: tpu7x:2x2x1
jax: 0.10.0
libtpu: 0.0.40
codegen_flags: <defaults>
</compile_context>

<pallas_src>
import numpy as np
import jax
import jax.numpy as jnp
from jax.experimental import pallas as pl
from jax.experimental.pallas import tpu as pltpu


def _fp_kernel_factory(num_layers, has_feat1, idx_bits, k_neighbors=3):
    low_mask = (1 << idx_bits) - 1

    def kernel(*refs):
        out_ref = refs[-1]
        it = iter(refs[:-1])
        x1t = next(it)[0].astype(jnp.float32)            # [C, tn]
        x2 = next(it)[0].astype(jnp.float32)             # [S, C]
        n2 = next(it)[0].astype(jnp.float32)             # [S, 1]
        f1t = next(it)[0] if has_feat1 else None         # [D1, tn] bf16
        f2t = next(it)[0]                                 # [D2, S]  bf16

        C, tn = x1t.shape
        S = x2.shape[0]

        # ---- pairwise squared distances on the MXU -------------------------
        # d = ||x1||^2 + ||x2||^2 - 2 * (x2 @ x1t); clamp tiny negative
        # cancellation results to 0 so the keyed bitcast below stays ordered.
        cross = jnp.dot(x2, x1t, preferred_element_type=jnp.float32)   # [S, tn]
        n1 = jnp.sum(x1t * x1t, axis=0, keepdims=True)                 # [1, tn]
        d = jnp.maximum((n2 + n1) - (cross + cross), 0.0)              # [S, tn]

        # ---- index-keyed gather-free 3-NN -----------------------------------
        # Pack the row index into the low idx_bits mantissa bits of d: keys in
        # each column are distinct, first-index tie-break is free, and each
        # neighbour pass needs only {min-reduce, compare, mask}.
        row = jax.lax.broadcasted_iota(jnp.int32, (S, tn), 0)
        key = (pltpu.bitcast(d, jnp.int32) & jnp.int32(~low_mask)) | row
        work = pltpu.bitcast(key, jnp.float32)            # still ordered (d >= 0)

        wmat = jnp.zeros((S, tn), jnp.float32)
        wsum = jnp.zeros((1, tn), jnp.float32)
        big = jnp.float32(3.4e38)
        for _ in range(k_neighbors):
            m = jnp.min(work, axis=0, keepdims=True)                   # [1, tn]
            onehot = work == m                                         # [S, tn]
            dmin = pltpu.bitcast(
                pltpu.bitcast(m, jnp.int32) & jnp.int32(~low_mask), jnp.float32)
            w = pl.reciprocal(dmin + 1e-8, approx=True)                # EUP, [1,tn]
            wmat = wmat + jnp.where(onehot, w, 0.0)
            wsum = wsum + w
            work = jnp.where(onehot, big, work)
        wmat = wmat * pl.reciprocal(wsum)          # exact normalize ([1,tn], cheap)

        # ---- interpolation: one MXU matmul [D2,S] @ [S,tn] -> [D2,tn] --------
        interp = jnp.dot(f2t, wmat.astype(f2t.dtype),
                         preferred_element_type=jnp.float32)

        # ---- Conv1d(k=1) + folded eval-mode BN + ReLU stack, channels-first --
        # Layer 0 splits its weight over [feat1 | interp] so no concat needed.
        h = None
        for li in range(num_layers):
            if li == 0:
                if has_feat1:
                    wa = next(it)[...]
                    wb = next(it)[...]
                    b = next(it)[...]
                    h = (jnp.dot(wa, f1t, preferred_element_type=jnp.float32)
                         + jnp.dot(wb, interp.astype(wb.dtype),
                                   preferred_element_type=jnp.float32)
                         + b)
                else:
                    wb = next(it)[...]
                    b = next(it)[...]
                    h = jnp.dot(wb, interp.astype(wb.dtype),
                                preferred_element_type=jnp.float32) + b
            else:
                w_ = next(it)[...]
                b = next(it)[...]
                h = jnp.dot(w_, h.astype(w_.dtype),
                            preferred_element_type=jnp.float32) + b
            h = jnp.maximum(h, 0.0)
        out_ref[0] = h.astype(out_ref.dtype)

    return kernel


def _fold_bn(W, b, gamma, beta, mean, var, eps=1e-5):
    # eval-mode BatchNorm folded into the 1x1 conv: y = (Wx+b - mean)*g/sqrt(v+eps) + beta
    scale = gamma / jnp.sqrt(var + eps)
    return W * scale[:, None], (b - mean) * scale + beta


def _physical_vmem_bytes():
    try:
        return int(pltpu.get_tpu_info().vmem_capacity_bytes)
    except Exception:
        return 64 * 1024 * 1024   # conservative default = v7x per-TensorCore VMEM


def _tile_pad_bytes(rows, cols, itemsize):
    # VMEM tile padding: sublanes to multiples of 8, lanes to multiples of 128.
    return ((rows + 7) // 8) * 8 * ((cols + 127) // 128) * 128 * itemsize


def _vmem_footprint(tile_n, *, S, C, D1, D2, dims_out, has_feat1, weight_bytes):
    f32, bf16 = 4, 2
    # Blocks that move along the N axis (double-buffered by the pipeline).
    pipelined = (_tile_pad_bytes(C, tile_n, f32)
                 + _tile_pad_bytes(dims_out[-1], tile_n, f32))
    if has_feat1:
        pipelined += _tile_pad_bytes(D1, tile_n, bf16)
    pipelined *= 2
    # Grid-invariant blocks (conservatively counted double-buffered).
    invariant = 2 * (_tile_pad_bytes(S, C, f32)       # x2
                     + _tile_pad_bytes(S, 1, f32)     # ||x2||^2
                     + _tile_pad_bytes(D2, S, bf16)   # feat2^T
                     + weight_bytes)
    # Kernel temporaries: ~8 live [S, tile_n] f32 arrays in the distance /
    # selection stage plus interp and the widest hidden activation.
    temps = 8 * S * tile_n * f32 + (D2 + max(dims_out)) * tile_n * f32
    return pipelined + invariant + temps


def _pick_tile_n(n_pad, footprint_fn, budget):
    for t in (2048, 1024, 512, 256, 128):
        if n_pad % t == 0 and footprint_fn(t) <= budget:
            return t
    return 128


def pointnet2_fp_pallas(x1, x2, feat1, feat2, layer_params, out_dtype=jnp.float32):
    B, N, C = x1.shape
    _, S, _ = x2.shape
    D2 = feat2.shape[-1]
    has_feat1 = feat1 is not None
    D1 = feat1.shape[-1] if has_feat1 else 0
    # TODO(synk): the S == 1 broadcast branch of the torch module is not
    # implemented in-kernel (this kernel implements the 3-NN path, S >= 3).
    assert S >= 3
    idx_bits = max(1, int(S - 1).bit_length())
    assert idx_bits <= 16, "S too large for the index-keyed argmin trick"

    folded = [_fold_bn(p["W"], p["b"], p["gamma"], p["beta"], p["mean"], p["var"])
              for p in layer_params]
    dims_out = [int(W.shape[0]) for W, _ in folded]
    Hlast = dims_out[-1]

    weight_bytes = 0
    for li, (W, _) in enumerate(folded):
        Dout, Din = W.shape
        if li == 0 and has_feat1:
            weight_bytes += _tile_pad_bytes(Dout, D1, 2) + _tile_pad_bytes(Dout, Din - D1, 2)
        else:
            weight_bytes += _tile_pad_bytes(Dout, Din, 2)
        weight_bytes += _tile_pad_bytes(Dout, 1, 4)

    # Channels-first; f32 coords (MXU distance + keyed argmin), bf16 features.
    x1t = jnp.transpose(x1, (0, 2, 1)).astype(jnp.float32)        # [B, C, N]
    x2f = x2.astype(jnp.float32)                                  # [B, S, C]
    n2 = jnp.sum(x2f * x2f, axis=-1, keepdims=True)               # [B, S, 1]
    f2t = jnp.transpose(feat2, (0, 2, 1)).astype(jnp.bfloat16)    # [B, D2, S]
    f1t = (jnp.transpose(feat1, (0, 2, 1)).astype(jnp.bfloat16)
           if has_feat1 else None)                                # [B, D1, N]

    # Pad N to a lane multiple so every tile/store is lane-dense, then pick the
    # biggest tile that fits the VMEM budget of the chip we are running on.
    n_pad = ((N + 127) // 128) * 128
    phys = _physical_vmem_bytes()
    fp = lambda t: _vmem_footprint(t, S=S, C=C, D1=D1, D2=D2, dims_out=dims_out,
                                   has_feat1=has_feat1, weight_bytes=weight_bytes)
    tile_n = _pick_tile_n(n_pad, fp, int(phys * 0.65))
    vmem_limit = int(min(phys * 0.85, max(32 << 20, fp(tile_n) + (12 << 20))))

    if n_pad != N:
        padding = ((0, 0), (0, 0), (0, n_pad - N))
        x1t = jnp.pad(x1t, padding)
        if has_feat1:
            f1t = jnp.pad(f1t, padding)
    n_tiles = n_pad // tile_n

    inputs = [x1t, x2f, n2]
    in_specs = [
        pl.BlockSpec((1, C, tile_n), lambda b, n: (b, 0, n)),
        pl.BlockSpec((1, S, C), lambda b, n: (b, 0, 0)),
        pl.BlockSpec((1, S, 1), lambda b, n: (b, 0, 0)),
    ]
    if has_feat1:
        inputs.append(f1t)
        in_specs.append(pl.BlockSpec((1, D1, tile_n), lambda b, n: (b, 0, n)))
    inputs.append(f2t)
    in_specs.append(pl.BlockSpec((1, D2, S), lambda b, n: (b, 0, 0)))

    def const_spec(shape):
        # Grid-invariant block (weights/biases): the block index never changes,
        # so Pallas fetches it once and keeps it resident in VMEM.
        # TODO(synk): switch to pipeline_mode=pl.Buffered(1) once single
        # buffering of grid-invariant blocks is verified on this JAX build.
        return pl.BlockSpec(shape, lambda b, n: tuple(0 for _ in shape))

    for li, (W, bvec) in enumerate(folded):
        Dout = W.shape[0]
        bcol = bvec.reshape(Dout, 1).astype(jnp.float32)
        if li == 0 and has_feat1:
            wa = W[:, :D1].astype(jnp.bfloat16)     # [Dout, D1]
            wb = W[:, D1:].astype(jnp.bfloat16)     # [Dout, D2]
            inputs += [wa, wb, bcol]
            in_specs += [const_spec(wa.shape), const_spec(wb.shape),
                         const_spec(bcol.shape)]
        else:
            wt = W.astype(jnp.bfloat16)             # [Dout, Din]
            inputs += [wt, bcol]
            in_specs += [const_spec(wt.shape), const_spec(bcol.shape)]

    kernel = _fp_kernel_factory(len(folded), has_feat1, idx_bits)
    out = pl.pallas_call(
        kernel,
        out_shape=jax.ShapeDtypeStruct((B, Hlast, n_pad), out_dtype),
        grid=(B, n_tiles),
        in_specs=in_specs,
        out_specs=pl.BlockSpec((1, Hlast, tile_n), lambda b, n: (b, 0, n)),
        compiler_params=pltpu.CompilerParams(
            dimension_semantics=("parallel", "parallel"),
            vmem_limit_bytes=vmem_limit),
    )(*inputs)
    if n_pad != N:
        out = out[:, :, :N]
    # Already in PyTorch's [B, D', N] layout — no wrapper transpose needed.
    return out


def pointnet2_fp_reference(x1, x2, feat1, feat2, layer_params):
    """Pure-JAX reference mirroring the torch forward (eval-mode BN), f32."""
    B = x1.shape[0]
    # torch square_distance form: -2*ab + ||a||^2 + ||b||^2
    d = (-2.0 * jnp.einsum("bnc,bsc->bns", x1, x2)
         + jnp.sum(x1 ** 2, -1)[:, :, None]
         + jnp.sum(x2 ** 2, -1)[:, None, :])                               # [B,N,S]
    idx = jnp.argsort(d, axis=-1)[:, :, :3]
    dists = jnp.take_along_axis(d, idx, axis=-1)
    recip = 1.0 / (dists + 1e-8)
    weight = recip / jnp.sum(recip, axis=-1, keepdims=True)
    gathered = feat2[jnp.arange(B)[:, None, None], idx]                    # [B,N,3,D2]
    interp = jnp.sum(gathered * weight[..., None], axis=2)                 # [B,N,D2]
    h = jnp.concatenate([feat1, interp], axis=-1) if feat1 is not None else interp
    for p in layer_params:
        W, b = _fold_bn(p["W"], p["b"], p["gamma"], p["beta"], p["mean"], p["var"])
        h = jnp.maximum(h @ W.T + b, 0.0)
    return jnp.transpose(h, (0, 2, 1))


if __name__ == "__main__":
    key = jax.random.PRNGKey(0)
    B, N, S, C = 2, 64, 16, 3
    D1, D2 = 16, 32
    sizes = [32, 32]
    input_dims = D1 + D2

    keys = jax.random.split(key, 5)
    x1 = jax.random.normal(keys[0], (B, N, C), jnp.float32)
    x2 = jax.random.normal(keys[1], (B, S, C), jnp.float32)
    feat1 = jax.random.normal(keys[2], (B, N, D1), jnp.float32)
    feat2 = jax.random.normal(keys[3], (B, S, D2), jnp.float32)

    dims = [input_dims] + sizes
    pkeys = jax.random.split(keys[4], len(sizes) * 6)
    layer_params = []
    for i in range(1, len(dims)):
        Din, Dout = dims[i - 1], dims[i]
        kk = pkeys[(i - 1) * 6:(i - 1) * 6 + 6]
        layer_params.append(dict(
            W=0.2 * jax.random.normal(kk[0], (Dout, Din), jnp.float32),
            b=0.1 * jax.random.normal(kk[1], (Dout,), jnp.float32),
            gamma=1.0 + 0.1 * jax.random.normal(kk[2], (Dout,), jnp.float32),
            beta=0.1 * jax.random.normal(kk[3], (Dout,), jnp.float32),
            mean=0.1 * jax.random.normal(kk[4], (Dout,), jnp.float32),
            var=0.5 + jnp.abs(jax.random.normal(kk[5], (Dout,), jnp.float32)),
        ))

    out = pointnet2_fp_pallas(x1, x2, feat1, feat2, layer_params)
    out = jax.block_until_ready(out)

    ref = pointnet2_fp_reference(x1, x2, feat1, feat2, layer_params)
    np.testing.assert_allclose(np.asarray(out), np.asarray(ref), rtol=5e-2, atol=5e-2)
    assert out.shape == (B, sizes[-1], N)
    print("KERNEL_OK")
</pallas_src>

<mosaic_0001>
module attributes {stable_mosaic.version = 11 : i64} {
  func.func @kernel(%arg0: i32, %arg1: i32, %arg2: memref<1x3x128xf32, #tpu.memory_space<vmem>>, %arg3: memref<1x16x3xf32, #tpu.memory_space<vmem>>, %arg4: memref<1x16x1xf32, #tpu.memory_space<vmem>>, %arg5: memref<1x16x128xbf16, #tpu.memory_space<vmem>>, %arg6: memref<1x32x16xbf16, #tpu.memory_space<vmem>>, %arg7: memref<32x16xbf16, #tpu.memory_space<vmem>>, %arg8: memref<32x32xbf16, #tpu.memory_space<vmem>>, %arg9: memref<32x1xf32, #tpu.memory_space<vmem>>, %arg10: memref<32x32xbf16, #tpu.memory_space<vmem>>, %arg11: memref<32x1xf32, #tpu.memory_space<vmem>>, %arg12: memref<1x32x128xf32, #tpu.memory_space<vmem>>) attributes {dimension_semantics = [#tpu.dimension_semantics<parallel>, #tpu.dimension_semantics<parallel>], iteration_bounds = array<i64: 2, 1>, scalar_prefetch = 0 : i64, scratch_operands = 0 : i64, tpu.core_type = #tpu.core_type<tc>, window_params = [{transform_indices = @transform_0, window_bounds = array<i64: 1, 3, 128>}, {transform_indices = @transform_1, window_bounds = array<i64: 1, 16, 3>}, {transform_indices = @transform_2, window_bounds = array<i64: 1, 16, 1>}, {transform_indices = @transform_3, window_bounds = array<i64: 1, 16, 128>}, {transform_indices = @transform_4, window_bounds = array<i64: 1, 32, 16>}, {pipeline_mode = #tpu.pipeline_mode<synchronous>, transform_indices = @transform_5, window_bounds = array<i64: 32, 16>}, {pipeline_mode = #tpu.pipeline_mode<synchronous>, transform_indices = @transform_6, window_bounds = array<i64: 32, 32>}, {pipeline_mode = #tpu.pipeline_mode<synchronous>, transform_indices = @transform_7, window_bounds = array<i64: 32, 1>}, {pipeline_mode = #tpu.pipeline_mode<synchronous>, transform_indices = @transform_8, window_bounds = array<i64: 32, 32>}, {pipeline_mode = #tpu.pipeline_mode<synchronous>, transform_indices = @transform_9, window_bounds = array<i64: 32, 1>}, {transform_indices = @transform_10, window_bounds = array<i64: 1, 32, 128>}]} {
    %c0 = arith.constant 0 : index
    %c0_0 = arith.constant 0 : index
    %c0_1 = arith.constant 0 : index
    %0 = vector.load %arg2[%c0, %c0_0, %c0_1] : memref<1x3x128xf32, #tpu.memory_space<vmem>>, vector<1x3x128xf32>
    %1 = vector.shape_cast %0 : vector<1x3x128xf32> to vector<3x128xf32>
    %c0_2 = arith.constant 0 : index
    %c0_3 = arith.constant 0 : index
    %c0_4 = arith.constant 0 : index
    %2 = vector.load %arg3[%c0_2, %c0_3, %c0_4] : memref<1x16x3xf32, #tpu.memory_space<vmem>>, vector<1x16x3xf32>
    %3 = vector.shape_cast %2 : vector<1x16x3xf32> to vector<16x3xf32>
    %c0_5 = arith.constant 0 : index
    %c0_6 = arith.constant 0 : index
    %c0_7 = arith.constant 0 : index
    %4 = vector.load %arg4[%c0_5, %c0_6, %c0_7] : memref<1x16x1xf32, #tpu.memory_space<vmem>>, vector<1x16x1xf32>
    %5 = vector.shape_cast %4 : vector<1x16x1xf32> to vector<16x1xf32>
    %c0_8 = arith.constant 0 : index
    %c0_9 = arith.constant 0 : index
    %c0_10 = arith.constant 0 : index
    %6 = vector.load %arg5[%c0_8, %c0_9, %c0_10] : memref<1x16x128xbf16, #tpu.memory_space<vmem>>, vector<1x16x128xbf16>
    %7 = vector.shape_cast %6 : vector<1x16x128xbf16> to vector<16x128xbf16>
    %c0_11 = arith.constant 0 : index
    %c0_12 = arith.constant 0 : index
    %c0_13 = arith.constant 0 : index
    %8 = vector.load %arg6[%c0_11, %c0_12, %c0_13] : memref<1x32x16xbf16, #tpu.memory_space<vmem>>, vector<1x32x16xbf16>
    %9 = vector.shape_cast %8 : vector<1x32x16xbf16> to vector<32x16xbf16>
    %cst = arith.constant dense<0.000000e+00> : vector<16x128xf32>
    %10 = tpu.matmul %3, %1, %cst {dimension_numbers = #tpu.dot_dimension_numbers<[1], [0], [0], [1], [0, 0, 1, 1], [], []>} : vector<16x3xf32>, vector<3x128xf32>, vector<16x128xf32> -> vector<16x128xf32>
    %11 = arith.mulf %1, %1 : vector<3x128xf32>
    %cst_14 = arith.constant dense<0.000000e+00> : vector<128xf32>
    %12 = vector.multi_reduction <add>, %11, %cst_14 [0] : vector<3x128xf32> to vector<128xf32>
    %13 = vector.shape_cast %12 : vector<128xf32> to vector<1x128xf32>
    %14 = vector.broadcast %5 : vector<16x1xf32> to vector<16x128xf32>
    %15 = vector.broadcast %13 : vector<1x128xf32> to vector<16x128xf32>
    %16 = arith.addf %14, %15 : vector<16x128xf32>
    %17 = arith.addf %10, %10 : vector<16x128xf32>
    %18 = arith.subf %16, %17 : vector<16x128xf32>
    %cst_15 = arith.constant 0.000000e+00 : f32
    %19 = vector.broadcast %cst_15 : f32 to vector<16x128xf32>
    %20 = arith.maximumf %18, %19 : vector<16x128xf32>
    %21 = tpu.iota {dimensions = array<i32: 0>} : vector<16x128xi32>
    %22 = tpu.bitcast %20 : vector<16x128xf32> -> vector<16x128xi32>
    %c-16_i32 = arith.constant -16 : i32
    %23 = vector.broadcast %c-16_i32 : i32 to vector<16x128xi32>
    %24 = arith.andi %22, %23 : vector<16x128xi32>
    %25 = arith.ori %24, %21 : vector<16x128xi32>
    %26 = tpu.bitcast %25 : vector<16x128xi32> -> vector<16x128xf32>
    %cst_16 = arith.constant 0.000000e+00 : f32
    %27 = vector.broadcast %cst_16 : f32 to vector<16x128xf32>
    %cst_17 = arith.constant 0.000000e+00 : f32
    %28 = vector.broadcast %cst_17 : f32 to vector<1x128xf32>
    %cst_18 = arith.constant dense<0x7F800000> : vector<128xf32>
    %29 = vector.multi_reduction <minimumf>, %26, %cst_18 [0] : vector<16x128xf32> to vector<128xf32>
    %30 = vector.shape_cast %29 : vector<128xf32> to vector<1x128xf32>
    %31 = vector.broadcast %30 : vector<1x128xf32> to vector<16x128xf32>
    %32 = arith.cmpf oeq, %26, %31 : vector<16x128xf32>
    %33 = tpu.bitcast %30 : vector<1x128xf32> -> vector<1x128xi32>
    %c-16_i32_19 = arith.constant -16 : i32
    %34 = vector.broadcast %c-16_i32_19 : i32 to vector<1x128xi32>
    %35 = arith.andi %33, %34 : vector<1x128xi32>
    %36 = tpu.bitcast %35 : vector<1x128xi32> -> vector<1x128xf32>
    %cst_20 = arith.constant 9.99999993E-9 : f32
    %37 = vector.broadcast %cst_20 : f32 to vector<1x128xf32>
    %38 = arith.addf %36, %37 : vector<1x128xf32>
    %39 = tpu.reciprocal %38 {approx = true} : vector<1x128xf32> -> vector<1x128xf32>
    %cst_21 = arith.constant 0.000000e+00 : f32
    %40 = vector.shape_cast %39 : vector<1x128xf32> to vector<1x128xf32>
    %41 = vector.broadcast %40 : vector<1x128xf32> to vector<16x128xf32>
    %42 = vector.broadcast %cst_21 : f32 to vector<16x128xf32>
    %43 = arith.select %32, %41, %42 : vector<16x128xi1>, vector<16x128xf32>
    %44 = arith.addf %27, %43 : vector<16x128xf32>
    %45 = arith.addf %28, %39 : vector<1x128xf32>
    %cst_22 = arith.constant 3.400000e+38 : f32
    %46 = vector.broadcast %cst_22 : f32 to vector<16x128xf32>
    %47 = arith.select %32, %46, %26 : vector<16x128xi1>, vector<16x128xf32>
    %cst_23 = arith.constant dense<0x7F800000> : vector<128xf32>
    %48 = vector.multi_reduction <minimumf>, %47, %cst_23 [0] : vector<16x128xf32> to vector<128xf32>
    %49 = vector.shape_cast %48 : vector<128xf32> to vector<1x128xf32>
    %50 = vector.broadcast %49 : vector<1x128xf32> to vector<16x128xf32>
    %51 = arith.cmpf oeq, %47, %50 : vector<16x128xf32>
    %52 = tpu.bitcast %49 : vector<1x128xf32> -> vector<1x128xi32>
    %c-16_i32_24 = arith.constant -16 : i32
    %53 = vector.broadcast %c-16_i32_24 : i32 to vector<1x128xi32>
    %54 = arith.andi %52, %53 : vector<1x128xi32>
    %55 = tpu.bitcast %54 : vector<1x128xi32> -> vector<1x128xf32>
    %cst_25 = arith.constant 9.99999993E-9 : f32
    %56 = vector.broadcast %cst_25 : f32 to vector<1x128xf32>
    %57 = arith.addf %55, %56 : vector<1x128xf32>
    %58 = tpu.reciprocal %57 {approx = true} : vector<1x128xf32> -> vector<1x128xf32>
    %cst_26 = arith.constant 0.000000e+00 : f32
    %59 = vector.shape_cast %58 : vector<1x128xf32> to vector<1x128xf32>
    %60 = vector.broadcast %59 : vector<1x128xf32> to vector<16x128xf32>
    %61 = vector.broadcast %cst_26 : f32 to vector<16x128xf32>
    %62 = arith.select %51, %60, %61 : vector<16x128xi1>, vector<16x128xf32>
    %63 = arith.addf %44, %62 : vector<16x128xf32>
    %64 = arith.addf %45, %58 : vector<1x128xf32>
    %cst_27 = arith.constant 3.400000e+38 : f32
    %65 = vector.broadcast %cst_27 : f32 to vector<16x128xf32>
    %66 = arith.select %51, %65, %47 : vector<16x128xi1>, vector<16x128xf32>
    %cst_28 = arith.constant dense<0x7F800000> : vector<128xf32>
    %67 = vector.multi_reduction <minimumf>, %66, %cst_28 [0] : vector<16x128xf32> to vector<128xf32>
    %68 = vector.shape_cast %67 : vector<128xf32> to vector<1x128xf32>
    %69 = vector.broadcast %68 : vector<1x128xf32> to vector<16x128xf32>
    %70 = arith.cmpf oeq, %66, %69 : vector<16x128xf32>
    %71 = tpu.bitcast %68 : vector<1x128xf32> -> vector<1x128xi32>
    %c-16_i32_29 = arith.constant -16 : i32
    %72 = vector.broadcast %c-16_i32_29 : i32 to vector<1x128xi32>
    %73 = arith.andi %71, %72 : vector<1x128xi32>
    %74 = tpu.bitcast %73 : vector<1x128xi32> -> vector<1x128xf32>
    %cst_30 = arith.constant 9.99999993E-9 : f32
    %75 = vector.broadcast %cst_30 : f32 to vector<1x128xf32>
    %76 = arith.addf %74, %75 : vector<1x128xf32>
    %77 = tpu.reciprocal %76 {approx = true} : vector<1x128xf32> -> vector<1x128xf32>
    %cst_31 = arith.constant 0.000000e+00 : f32
    %78 = vector.shape_cast %77 : vector<1x128xf32> to vector<1x128xf32>
    %79 = vector.broadcast %78 : vector<1x128xf32> to vector<16x128xf32>
    %80 = vector.broadcast %cst_31 : f32 to vector<16x128xf32>
    %81 = arith.select %70, %79, %80 : vector<16x128xi1>, vector<16x128xf32>
    %82 = arith.addf %63, %81 : vector<16x128xf32>
    %83 = arith.addf %64, %77 : vector<1x128xf32>
    %84 = tpu.reciprocal %83 : vector<1x128xf32> -> vector<1x128xf32>
    %85 = vector.broadcast %84 : vector<1x128xf32> to vector<16x128xf32>
    %86 = arith.mulf %82, %85 : vector<16x128xf32>
    %87 = arith.truncf %86 : vector<16x128xf32> to vector<16x128xbf16>
    %cst_32 = arith.constant dense<0.000000e+00> : vector<32x128xf32>
    %88 = tpu.matmul %9, %87, %cst_32 {dimension_numbers = #tpu.dot_dimension_numbers<[1], [0], [0], [1], [0, 0, 1, 1], [], []>} : vector<32x16xbf16>, vector<16x128xbf16>, vector<32x128xf32> -> vector<32x128xf32>
    %c0_33 = arith.constant 0 : index
    %c0_34 = arith.constant 0 : index
    %89 = vector.load %arg7[%c0_33, %c0_34] : memref<32x16xbf16, #tpu.memory_space<vmem>>, vector<32x16xbf16>
    %c0_35 = arith.constant 0 : index
    %c0_36 = arith.constant 0 : index
    %90 = vector.load %arg8[%c0_35, %c0_36] : memref<32x32xbf16, #tpu.memory_space<vmem>>, vector<32x32xbf16>
    %c0_37 = arith.constant 0 : index
    %c0_38 = arith.constant 0 : index
    %91 = vector.load %arg9[%c0_37, %c0_38] : memref<32x1xf32, #tpu.memory_space<vmem>>, vector<32x1xf32>
    %cst_39 = arith.constant dense<0.000000e+00> : vector<32x128xf32>
    %92 = tpu.matmul %89, %7, %cst_39 {dimension_numbers = #tpu.dot_dimension_numbers<[1], [0], [0], [1], [0, 0, 1, 1], [], []>} : vector<32x16xbf16>, vector<16x128xbf16>, vector<32x128xf32> -> vector<32x128xf32>
    %93 = arith.truncf %88 : vector<32x128xf32> to vector<32x128xbf16>
    %cst_40 = arith.constant dense<0.000000e+00> : vector<32x128xf32>
    %94 = tpu.matmul %90, %93, %cst_40 {dimension_numbers = #tpu.dot_dimension_numbers<[1], [0], [0], [1], [0, 0, 1, 1], [], []>} : vector<32x32xbf16>, vector<32x128xbf16>, vector<32x128xf32> -> vector<32x128xf32>
    %95 = arith.addf %92, %94 : vector<32x128xf32>
    %96 = vector.broadcast %91 : vector<32x1xf32> to vector<32x128xf32>
    %97 = arith.addf %95, %96 : vector<32x128xf32>
    %cst_41 = arith.constant 0.000000e+00 : f32
    %98 = vector.broadcast %cst_41 : f32 to vector<32x128xf32>
    %99 = arith.maximumf %97, %98 : vector<32x128xf32>
    %c0_42 = arith.constant 0 : index
    %c0_43 = arith.constant 0 : index
    %100 = vector.load %arg10[%c0_42, %c0_43] : memref<32x32xbf16, #tpu.memory_space<vmem>>, vector<32x32xbf16>
    %c0_44 = arith.constant 0 : index
    %c0_45 = arith.constant 0 : index
    %101 = vector.load %arg11[%c0_44, %c0_45] : memref<32x1xf32, #tpu.memory_space<vmem>>, vector<32x1xf32>
    %102 = arith.truncf %99 : vector<32x128xf32> to vector<32x128xbf16>
    %cst_46 = arith.constant dense<0.000000e+00> : vector<32x128xf32>
    %103 = tpu.matmul %100, %102, %cst_46 {dimension_numbers = #tpu.dot_dimension_numbers<[1], [0], [0], [1], [0, 0, 1, 1], [], []>} : vector<32x32xbf16>, vector<32x128xbf16>, vector<32x128xf32> -> vector<32x128xf32>
    %104 = vector.broadcast %101 : vector<32x1xf32> to vector<32x128xf32>
    %105 = arith.addf %103, %104 : vector<32x128xf32>
    %cst_47 = arith.constant 0.000000e+00 : f32
    %106 = vector.broadcast %cst_47 : f32 to vector<32x128xf32>
    %107 = arith.maximumf %105, %106 : vector<32x128xf32>
    %c0_48 = arith.constant 0 : index
    %c0_49 = arith.constant 0 : index
    %c0_50 = arith.constant 0 : index
    %108 = vector.load %arg12[%c0_48, %c0_49, %c0_50] : memref<1x32x128xf32, #tpu.memory_space<vmem>>, vector<1x32x128xf32>
    %109 = vector.shape_cast %108 : vector<1x32x128xf32> to vector<32x128xf32>
    %110 = vector.shape_cast %107 : vector<32x128xf32> to vector<1x32x128xf32>
    tpu.vector_store %arg12[%c0_48, %c0_49, %c0_50], %110 {strides = array<i32>} : memref<1x32x128xf32, #tpu.memory_space<vmem>>, vector<1x32x128xf32>,
    return
  }
  func.func @transform_0(%arg0: i32, %arg1: i32) -> (i32, i32, i32) {
    %c0_i32 = arith.constant 0 : i32
    %c0_i32_0 = arith.constant 0 : i32
    return %arg0, %c0_i32, %arg1 : i32, i32, i32
  }
  func.func @transform_1(%arg0: i32, %arg1: i32) -> (i32, i32, i32) {
    %c0_i32 = arith.constant 0 : i32
    %c0_i32_0 = arith.constant 0 : i32
    %c0_i32_1 = arith.constant 0 : i32
    return %arg0, %c0_i32, %c0_i32_0 : i32, i32, i32
  }
  func.func @transform_2(%arg0: i32, %arg1: i32) -> (i32, i32, i32) {
    %c0_i32 = arith.constant 0 : i32
    %c0_i32_0 = arith.constant 0 : i32
    %c0_i32_1 = arith.constant 0 : i32
    return %arg0, %c0_i32, %c0_i32_0 : i32, i32, i32
  }
  func.func @transform_3(%arg0: i32, %arg1: i32) -> (i32, i32, i32) {
    %c0_i32 = arith.constant 0 : i32
    %c0_i32_0 = arith.constant 0 : i32
    return %arg0, %c0_i32, %arg1 : i32, i32, i32
  }
  func.func @transform_4(%arg0: i32, %arg1: i32) -> (i32, i32, i32) {
    %c0_i32 = arith.constant 0 : i32
    %c0_i32_0 = arith.constant 0 : i32
    %c0_i32_1 = arith.constant 0 : i32
    return %arg0, %c0_i32, %c0_i32_0 : i32, i32, i32
  }
  func.func @transform_5(%arg0: i32, %arg1: i32) -> (i32, i32) {
    %c0_i32 = arith.constant 0 : i32
    %c0_i32_0 = arith.constant 0 : i32
    %c0_i32_1 = arith.constant 0 : i32
    return %c0_i32, %c0_i32_0 : i32, i32
  }
  func.func @transform_6(%arg0: i32, %arg1: i32) -> (i32, i32) {
    %c0_i32 = arith.constant 0 : i32
    %c0_i32_0 = arith.constant 0 : i32
    %c0_i32_1 = arith.constant 0 : i32
    return %c0_i32, %c0_i32_0 : i32, i32
  }
  func.func @transform_7(%arg0: i32, %arg1: i32) -> (i32, i32) {
    %c0_i32 = arith.constant 0 : i32
    %c0_i32_0 = arith.constant 0 : i32
    %c0_i32_1 = arith.constant 0 : i32
    return %c0_i32, %c0_i32_0 : i32, i32
  }
  func.func @transform_8(%arg0: i32, %arg1: i32) -> (i32, i32) {
    %c0_i32 = arith.constant 0 : i32
    %c0_i32_0 = arith.constant 0 : i32
    %c0_i32_1 = arith.constant 0 : i32
    return %c0_i32, %c0_i32_0 : i32, i32
  }
  func.func @transform_9(%arg0: i32, %arg1: i32) -> (i32, i32) {
    %c0_i32 = arith.constant 0 : i32
    %c0_i32_0 = arith.constant 0 : i32
    %c0_i32_1 = arith.constant 0 : i32
    return %c0_i32, %c0_i32_0 : i32, i32
  }
  func.func @transform_10(%arg0: i32, %arg1: i32) -> (i32, i32, i32) {
    %c0_i32 = arith.constant 0 : i32
    %c0_i32_0 = arith.constant 0 : i32
    return %arg0, %c0_i32, %arg1 : i32, i32, i32
  }
}

</mosaic_0001>

<llo_original>
// kernel: tpu_custom_call.1
$region0: #{tpu_custom_call.1}
  #allocation0 [shape = 'u32[]', space=smem, size = 0x4, offset = 0x4, fixed_abs, tag = 'smem constant byte address 0x4 - core index']
  #allocation1 [shape = 'u32[144,128]{1,0:T(1,128)}', space=vmem, size = 0x12000, scoped, tag = 'internal scratch']
  %s0 = inlined_call_operand.vmem [shape: f32[2,3,128], index: 0, kind: input, shape index: {}]
  %s1 = inlined_call_operand.vmem [shape: f32[2,16,3], index: 1, kind: input, shape index: {}]
  %s2 = inlined_call_operand.vmem [shape: f32[2,16,1], index: 2, kind: input, shape index: {}]
  %s3 = inlined_call_operand.vmem [shape: bf16[2,16,128], index: 3, kind: input, shape index: {}]
  %s4 = inlined_call_operand.vmem [shape: bf16[2,32,16], index: 4, kind: input, shape index: {}]
  %s5 = inlined_call_operand.vmem [shape: bf16[32,16], index: 5, kind: input, shape index: {}]
  %s6 = inlined_call_operand.vmem [shape: bf16[32,32], index: 6, kind: input, shape index: {}]
  %s7 = inlined_call_operand.vmem [shape: f32[32,1], index: 7, kind: input, shape index: {}]
  %s8 = inlined_call_operand.vmem [shape: bf16[32,32], index: 8, kind: input, shape index: {}]
  %s9 = inlined_call_operand.vmem [shape: f32[32,1], index: 9, kind: input, shape index: {}]
  %s10 = inlined_call_operand.hbm [shape: f32[2,32,128], index: 10, kind: output, shape index: {}]
  %s11 = sld [smem:[#allocation0]]
  $region73: #{tpu_custom_call.1} parent=0
    _
  %s13 = ssub.s32 1, %s11
  %s14 = scalar_select 0, %s13, %s11
  $region1: #{tpu_custom_call.1} parent=0
    #allocation2 [shape = 'u8[32768]{0}', space=vmem, size = 0x8000, scoped, tag = 'output window, operand 0']
    #allocation3 [shape = 's32[2]{0}', space=sflag, size = 0x8, scoped, tag = 'scoped memory for tpu_custom_call.1']
    %15 = vsyncpa [#allocation3], 0
    %s16 = scalar_lea.sflag [#allocation3], 1
    %17 = vsyncpa %s16, 0
    loop: start=0, step=1, limit=4
    $region2: #{tpu_custom_call.1} parent=1 // loop_pre_header
      _
    $region3: #{tpu_custom_call.1} parent=1 // loop_header
      %s19 = sphi 0, %s23
      %p20 = scmp.ge.s32.totalorder %s19, 4
      %s26 = sphi 0, %s38
      %s27 = sphi 0, %s34
      %s28 = sphi 0, %s26
      %s29 = sphi 0, %s27
      %s30 = sphi 0, %s28
      %s31 = sphi 0, %s29
      %s43 = sphi 0, %s45
      %s46 = sphi 0, %s43
      %s47 = sphi 0, %s46
      %s63 = sphi 0, %s47
      %s69 = sphi 0, %s71
      %s72 = sphi 0, %s69
      %s73 = sphi 0, %s72
      %s89 = sphi 0, %s73
      %s95 = sphi 0, %s97
      %s98 = sphi 0, %s95
      %s99 = sphi 0, %s98
      %s115 = sphi 0, %s99
      %s123 = sphi 0, %s125
      %s126 = sphi 0, %s123
      %s127 = sphi 0, %s126
      %s143 = sphi 0, %s127
      %s149 = sphi 0, %s151
      %s152 = sphi 0, %s149
      %s153 = sphi 0, %s152
      %s169 = sphi 0, %s153
      %s173 = sphi 0, %s173
      %s175 = sphi 0, %s173
      %s176 = sphi 0, %s175
      %s190 = sphi 0, %s176
      %s194 = sphi 0, %s194
      %s196 = sphi 0, %s194
      %s197 = sphi 0, %s196
      %s211 = sphi 0, %s197
      %s215 = sphi 0, %s215
      %s217 = sphi 0, %s215
      %s218 = sphi 0, %s217
      %s232 = sphi 0, %s218
      %s236 = sphi 0, %s236
      %s238 = sphi 0, %s236
      %s239 = sphi 0, %s238
      %s253 = sphi 0, %s239
      %s257 = sphi 0, %s257
      %s259 = sphi 0, %s257
      %s260 = sphi 0, %s259
      %s274 = sphi 0, %s260
      %s282 = sphi 0, %s284
      %s285 = sphi 0, %s282
      %s286 = sphi 0, %s285
      %s302 = sphi 0, %s286
    $region4: #{tpu_custom_call.1} parent=1 // loop_header_branch
      %22 = sbr.rel (%p20) target = $region8
    $region5: #{tpu_custom_call.1} parent=1 // loop_body
      %s24 = ssub.s32 %s19, 1
      %s25 = ssub.s32 %s19, 2
      %s32 = sadd.s32 1, %s27
      %p33 = scmp.ge.s32.totalorder %s32, 1
      %s34 = scalar_select %p33, 0, %s32
      %s35 = sadd.s32 1, %s26
      %s36 = scalar_select %p33, %s35, %s26
      %p37 = scmp.ge.s32.totalorder %s36, 2
      %s38 = scalar_select %p37, 0, %s36
      %s39 = ssub.s32 %s26, %s38
      %s40 = ssub.s32 %s27, %s34
      %s41 = sor.u32 %s39, %s40
      %p42 = scmp.eq.s32.totalorder %s41, 0
      %s44 = sadd.s32 %s43, 1
      %s45 = scalar_select %p42, %s43, %s44
      %p48 = pneg %p42
      %p49 = scmp.eq.s32.totalorder %s19, 1
      %p50 = por %p48, %p49
      %p51 = scmp.ne.s32.totalorder %s43, %s46
      %p52 = scmp.eq.s32.totalorder %s19, 0
      %p53 = por %p51, %p52
      %p54 = scmp.ne.s32.totalorder %s43, %s46
      %p55 = scmp.eq.s32.totalorder %s24, 1
      %p56 = por %p54, %p55
      %p57 = scmp.ne.s32.totalorder %s46, %s47
      %p58 = scmp.eq.s32.totalorder %s24, 0
      %p59 = por %p57, %p58
      %p60 = scmp.ne.s32.totalorder %s46, %s47
      %p61 = scmp.eq.s32.totalorder %s25, 1
      %p62 = por %p60, %p61
      %p64 = scmp.ne.s32.totalorder %s47, %s63
      %p65 = scmp.eq.s32.totalorder %s25, 0
      %p66 = por %p64, %p65
      %s67 = ssub.s32 %s26, %s38
      %p68 = scmp.eq.s32.totalorder %s67, 0
      %s70 = sadd.s32 %s69, 1
      %s71 = scalar_select %p68, %s69, %s70
      %p74 = pneg %p68
      %p75 = scmp.eq.s32.totalorder %s19, 1
      %p76 = por %p74, %p75
      %p77 = scmp.ne.s32.totalorder %s69, %s72
      %p78 = scmp.eq.s32.totalorder %s19, 0
      %p79 = por %p77, %p78
      %p80 = scmp.ne.s32.totalorder %s69, %s72
      %p81 = scmp.eq.s32.totalorder %s24, 1
      %p82 = por %p80, %p81
      %p83 = scmp.ne.s32.totalorder %s72, %s73
      %p84 = scmp.eq.s32.totalorder %s24, 0
      %p85 = por %p83, %p84
      %p86 = scmp.ne.s32.totalorder %s72, %s73
      %p87 = scmp.eq.s32.totalorder %s25, 1
      %p88 = por %p86, %p87
      %p90 = scmp.ne.s32.totalorder %s73, %s89
      %p91 = scmp.eq.s32.totalorder %s25, 0
      %p92 = por %p90, %p91
      %s93 = ssub.s32 %s26, %s38
      %p94 = scmp.eq.s32.totalorder %s93, 0
      %s96 = sadd.s32 %s95, 1
      %s97 = scalar_select %p94, %s95, %s96
      %p100 = pneg %p94
      %p101 = scmp.eq.s32.totalorder %s19, 1
      %p102 = por %p100, %p101
      %p103 = scmp.ne.s32.totalorder %s95, %s98
      %p104 = scmp.eq.s32.totalorder %s19, 0
      %p105 = por %p103, %p104
      %p106 = scmp.ne.s32.totalorder %s95, %s98
      %p107 = scmp.eq.s32.totalorder %s24, 1
      %p108 = por %p106, %p107
      %p109 = scmp.ne.s32.totalorder %s98, %s99
      %p110 = scmp.eq.s32.totalorder %s24, 0
      %p111 = por %p109, %p110
      %p112 = scmp.ne.s32.totalorder %s98, %s99
      %p113 = scmp.eq.s32.totalorder %s25, 1
      %p114 = por %p112, %p113
      %p116 = scmp.ne.s32.totalorder %s99, %s115
      %p117 = scmp.eq.s32.totalorder %s25, 0
      %p118 = por %p116, %p117
      %s119 = ssub.s32 %s26, %s38
      %s120 = ssub.s32 %s27, %s34
      %s121 = sor.u32 %s119, %s120
      %p122 = scmp.eq.s32.totalorder %s121, 0
      %s124 = sadd.s32 %s123, 1
      %s125 = scalar_select %p122, %s123, %s124
      %p128 = pneg %p122
      %p129 = scmp.eq.s32.totalorder %s19, 1
      %p130 = por %p128, %p129
      %p131 = scmp.ne.s32.totalorder %s123, %s126
      %p132 = scmp.eq.s32.totalorder %s19, 0
      %p133 = por %p131, %p132
      %p134 = scmp.ne.s32.totalorder %s123, %s126
      %p135 = scmp.eq.s32.totalorder %s24, 1
      %p136 = por %p134, %p135
      %p137 = scmp.ne.s32.totalorder %s126, %s127
      %p138 = scmp.eq.s32.totalorder %s24, 0
      %p139 = por %p137, %p138
      %p140 = scmp.ne.s32.totalorder %s126, %s127
      %p141 = scmp.eq.s32.totalorder %s25, 1
      %p142 = por %p140, %p141
      %p144 = scmp.ne.s32.totalorder %s127, %s143
      %p145 = scmp.eq.s32.totalorder %s25, 0
      %p146 = por %p144, %p145
      %s147 = ssub.s32 %s26, %s38
      %p148 = scmp.eq.s32.totalorder %s147, 0
      %s150 = sadd.s32 %s149, 1
      %s151 = scalar_select %p148, %s149, %s150
      %p154 = pneg %p148
      %p155 = scmp.eq.s32.totalorder %s19, 1
      %p156 = por %p154, %p155
      %p157 = scmp.ne.s32.totalorder %s149, %s152
      %p158 = scmp.eq.s32.totalorder %s19, 0
      %p159 = por %p157, %p158
      %p160 = scmp.ne.s32.totalorder %s149, %s152
      %p161 = scmp.eq.s32.totalorder %s24, 1
      %p162 = por %p160, %p161
      %p163 = scmp.ne.s32.totalorder %s152, %s153
      %p164 = scmp.eq.s32.totalorder %s24, 0
      %p165 = por %p163, %p164
      %p166 = scmp.ne.s32.totalorder %s152, %s153
      %p167 = scmp.eq.s32.totalorder %s25, 1
      %p168 = por %p166, %p167
      %p170 = scmp.ne.s32.totalorder %s153, %s169
      %p171 = scmp.eq.s32.totalorder %s25, 0
      %p172 = por %p170, %p171
      %s174 = sadd.s32 %s173, 1
      %p177 = scmp.eq.s32.totalorder %s19, 1
      %p178 = scmp.ne.s32.totalorder %s173, %s175
      %p179 = scmp.eq.s32.totalorder %s19, 0
      %p180 = por %p178, %p179
      %p181 = scmp.ne.s32.totalorder %s173, %s175
      %p182 = scmp.eq.s32.totalorder %s24, 1
      %p183 = por %p181, %p182
      %p184 = scmp.ne.s32.totalorder %s175, %s176
      %p185 = scmp.eq.s32.totalorder %s24, 0
      %p186 = por %p184, %p185
      %p187 = scmp.ne.s32.totalorder %s175, %s176
      %p188 = scmp.eq.s32.totalorder %s25, 1
      %p189 = por %p187, %p188
      %p191 = scmp.ne.s32.totalorder %s176, %s190
      %p192 = scmp.eq.s32.totalorder %s25, 0
      %p193 = por %p191, %p192
      %s195 = sadd.s32 %s194, 1
      %p198 = scmp.eq.s32.totalorder %s19, 1
      %p199 = scmp.ne.s32.totalorder %s194, %s196
      %p200 = scmp.eq.s32.totalorder %s19, 0
      %p201 = por %p199, %p200
      %p202 = scmp.ne.s32.totalorder %s194, %s196
      %p203 = scmp.eq.s32.totalorder %s24, 1
      %p204 = por %p202, %p203
      %p205 = scmp.ne.s32.totalorder %s196, %s197
      %p206 = scmp.eq.s32.totalorder %s24, 0
      %p207 = por %p205, %p206
      %p208 = scmp.ne.s32.totalorder %s196, %s197
      %p209 = scmp.eq.s32.totalorder %s25, 1
      %p210 = por %p208, %p209
      %p212 = scmp.ne.s32.totalorder %s197, %s211
      %p213 = scmp.eq.s32.totalorder %s25, 0
      %p214 = por %p212, %p213
      %s216 = sadd.s32 %s215, 1
      %p219 = scmp.eq.s32.totalorder %s19, 1
      %p220 = scmp.ne.s32.totalorder %s215, %s217
      %p221 = scmp.eq.s32.totalorder %s19, 0
      %p222 = por %p220, %p221
      %p223 = scmp.ne.s32.totalorder %s215, %s217
      %p224 = scmp.eq.s32.totalorder %s24, 1
      %p225 = por %p223, %p224
      %p226 = scmp.ne.s32.totalorder %s217, %s218
      %p227 = scmp.eq.s32.totalorder %s24, 0
      %p228 = por %p226, %p227
      %p229 = scmp.ne.s32.totalorder %s217, %s218
      %p230 = scmp.eq.s32.totalorder %s25, 1
      %p231 = por %p229, %p230
      %p233 = scmp.ne.s32.totalorder %s218, %s232
      %p234 = scmp.eq.s32.totalorder %s25, 0
      %p235 = por %p233, %p234
      %s237 = sadd.s32 %s236, 1
      %p240 = scmp.eq.s32.totalorder %s19, 1
      %p241 = scmp.ne.s32.totalorder %s236, %s238
      %p242 = scmp.eq.s32.totalorder %s19, 0
      %p243 = por %p241, %p242
      %p244 = scmp.ne.s32.totalorder %s236, %s238
      %p245 = scmp.eq.s32.totalorder %s24, 1
      %p246 = por %p244, %p245
      %p247 = scmp.ne.s32.totalorder %s238, %s239
      %p248 = scmp.eq.s32.totalorder %s24, 0
      %p249 = por %p247, %p248
      %p250 = scmp.ne.s32.totalorder %s238, %s239
      %p251 = scmp.eq.s32.totalorder %s25, 1
      %p252 = por %p250, %p251
      %p254 = scmp.ne.s32.totalorder %s239, %s253
      %p255 = scmp.eq.s32.totalorder %s25, 0
      %p256 = por %p254, %p255
      %s258 = sadd.s32 %s257, 1
      %p261 = scmp.eq.s32.totalorder %s19, 1
      %p262 = scmp.ne.s32.totalorder %s257, %s259
      %p263 = scmp.eq.s32.totalorder %s19, 0
      %p264 = por %p262, %p263
      %p265 = scmp.ne.s32.totalorder %s257, %s259
      %p266 = scmp.eq.s32.totalorder %s24, 1
      %p267 = por %p265, %p266
      %p268 = scmp.ne.s32.totalorder %s259, %s260
      %p269 = scmp.eq.s32.totalorder %s24, 0
      %p270 = por %p268, %p269
      %p271 = scmp.ne.s32.totalorder %s259, %s260
      %p272 = scmp.eq.s32.totalorder %s25, 1
      %p273 = por %p271, %p272
      %p275 = scmp.ne.s32.totalorder %s260, %s274
      %p276 = scmp.eq.s32.totalorder %s25, 0
      %p277 = por %p275, %p276
      %s278 = ssub.s32 %s26, %s38
      %s279 = ssub.s32 %s27, %s34
      %s280 = sor.u32 %s278, %s279
      %p281 = scmp.eq.s32.totalorder %s280, 0
      %s283 = sadd.s32 %s282, 1
      %s284 = scalar_select %p281, %s282, %s283
      %p287 = pneg %p281
      %p288 = scmp.eq.s32.totalorder %s19, 1
      %p289 = por %p287, %p288
      %p290 = scmp.ne.s32.totalorder %s282, %s285
      %p291 = scmp.eq.s32.totalorder %s19, 0
      %p292 = por %p290, %p291
      %p293 = scmp.ne.s32.totalorder %s282, %s285
      %p294 = scmp.eq.s32.totalorder %s24, 1
      %p295 = por %p293, %p294
      %p296 = scmp.ne.s32.totalorder %s285, %s286
      %p297 = scmp.eq.s32.totalorder %s24, 0
      %p298 = por %p296, %p297
      %p299 = scmp.ne.s32.totalorder %s285, %s286
      %p300 = scmp.eq.s32.totalorder %s25, 1
      %p301 = por %p299, %p300
      %p303 = scmp.ne.s32.totalorder %s286, %s302
      %p304 = scmp.eq.s32.totalorder %s25, 0
      %p305 = por %p303, %p304
      %p306 = scmp.le.s32.totalorder 1, %s19
      %p307 = scmp.lt.s32.totalorder %s19, 3
      %p308 = pnand %p306, %p307
      %p309 = pneg %p308
      // Predicated region
      $region9: #{tpu_custom_call.1} parent=5 // pred_check
        _
      $region10: #{tpu_custom_call.1} parent=5 // pred_check_branch
        %311 = sbr.rel (%p308) target = $region12
      $region11: #{tpu_custom_call.1} parent=5 // pred_region
        %s312 = ssub.s32 %s19, 1
        // Predicated region
        $region13: #{tpu_custom_call.1} parent=11 // pred_check
          %p313 = pneg %p186
        $region14: #{tpu_custom_call.1} parent=11 // pred_check_branch
          %315 = sbr.rel (%p313) target = $region16
        $region15: #{tpu_custom_call.1} parent=11 // pred_region
          _
        $region16: #{tpu_custom_call.1} parent=11 // pred_fallthru
          _
        // Predicated region
        $region17: #{tpu_custom_call.1} parent=11 // pred_check
          %p316 = pneg %p207
        $region18: #{tpu_custom_call.1} parent=11 // pred_check_branch
          %318 = sbr.rel (%p316) target = $region20
        $region19: #{tpu_custom_call.1} parent=11 // pred_region
          _
        $region20: #{tpu_custom_call.1} parent=11 // pred_fallthru
          _
        // Predicated region
        $region21: #{tpu_custom_call.1} parent=11 // pred_check
          %p319 = pneg %p228
        $region22: #{tpu_custom_call.1} parent=11 // pred_check_branch
          %321 = sbr.rel (%p319) target = $region24
        $region23: #{tpu_custom_call.1} parent=11 // pred_region
          _
        $region24: #{tpu_custom_call.1} parent=11 // pred_fallthru
          _
        // Predicated region
        $region25: #{tpu_custom_call.1} parent=11 // pred_check
          %p322 = pneg %p249
        $region26: #{tpu_custom_call.1} parent=11 // pred_check_branch
          %324 = sbr.rel (%p322) target = $region28
        $region27: #{tpu_custom_call.1} parent=11 // pred_region
          _
        $region28: #{tpu_custom_call.1} parent=11 // pred_fallthru
          _
        // Predicated region
        $region29: #{tpu_custom_call.1} parent=11 // pred_check
          %p325 = pneg %p270
        $region30: #{tpu_custom_call.1} parent=11 // pred_check_branch
          %327 = sbr.rel (%p325) target = $region32
        $region31: #{tpu_custom_call.1} parent=11 // pred_region
          _
        $region32: #{tpu_custom_call.1} parent=11 // pred_fallthru
          _
      $region12: #{tpu_custom_call.1} parent=5 // pred_fallthru
        _
      %p328 = scmp.lt.s32.totalorder %s19, 2
      // Predicated region
      $region33: #{tpu_custom_call.1} parent=5 // pred_check
        %p329 = pneg %p328
      $region34: #{tpu_custom_call.1} parent=5 // pred_check_branch
        %331 = sbr.rel (%p329) target = $region36
      $region35: #{tpu_custom_call.1} parent=5 // pred_region
        // Predicated region
        $region37: #{tpu_custom_call.1} parent=35 // pred_check
          %p332 = pneg %p53
        $region38: #{tpu_custom_call.1} parent=35 // pred_check_branch
          %334 = sbr.rel (%p332) target = $region40
        $region39: #{tpu_custom_call.1} parent=35 // pred_region
          %p335 = scmp.lt.s32.totalorder %s26, 1
          %s336 = scalar_select %p335, %s26, 1
          %p337 = scmp.lt.s32.totalorder %s27, 0
          %s338 = scalar_select %p337, %s27, 0
          %s339 = sadd.s32 %s338, %s336
          %s340 = smul.addr %s339, 4
          %s341 = scalar_lea.vmem %s0, %s340
        $region40: #{tpu_custom_call.1} parent=35 // pred_fallthru
          _
        // Predicated region
        $region41: #{tpu_custom_call.1} parent=35 // pred_check
          %p342 = pneg %p79
        $region42: #{tpu_custom_call.1} parent=35 // pred_check_branch
          %344 = sbr.rel (%p342) target = $region44
        $region43: #{tpu_custom_call.1} parent=35 // pred_region
          %p345 = scmp.lt.s32.totalorder %s26, 1
          %s346 = scalar_select %p345, %s26, 1
          %s347 = smul.addr %s346, 2
          %s348 = smul.addr %s347, 8
          %s349 = scalar_lea.vmem %s1, %s348
        $region44: #{tpu_custom_call.1} parent=35 // pred_fallthru
          _
        // Predicated region
        $region45: #{tpu_custom_call.1} parent=35 // pred_check
          %p350 = pneg %p105
        $region46: #{tpu_custom_call.1} parent=35 // pred_check_branch
          %352 = sbr.rel (%p350) target = $region48
        $region47: #{tpu_custom_call.1} parent=35 // pred_region
          %p353 = scmp.lt.s32.totalorder %s26, 1
          %s354 = scalar_select %p353, %s26, 1
          %s355 = smul.addr %s354, 2
          %s356 = smul.addr %s355, 8
          %s357 = scalar_lea.vmem %s2, %s356
        $region48: #{tpu_custom_call.1} parent=35 // pred_fallthru
          _
        // Predicated region
        $region49: #{tpu_custom_call.1} parent=35 // pred_check
          %p358 = pneg %p133
        $region50: #{tpu_custom_call.1} parent=35 // pred_check_branch
          %360 = sbr.rel (%p358) target = $region52
        $region51: #{tpu_custom_call.1} parent=35 // pred_region
          %p361 = scmp.lt.s32.totalorder %s26, 1
          %s362 = scalar_select %p361, %s26, 1
          %p363 = scmp.lt.s32.totalorder %s27, 0
          %s364 = scalar_select %p363, %s27, 0
          %s365 = smul.addr %s362, 2
          %s366 = sadd.s32 %s364, %s365
          %s367 = smul.addr %s366, 4
          %s368 = scalar_lea.vmem %s3, %s367
        $region52: #{tpu_custom_call.1} parent=35 // pred_fallthru
          _
        // Predicated region
        $region53: #{tpu_custom_call.1} parent=35 // pred_check
          %p369 = pneg %p159
        $region54: #{tpu_custom_call.1} parent=35 // pred_check_branch
          %371 = sbr.rel (%p369) target = $region56
        $region55: #{tpu_custom_call.1} parent=35 // pred_region
          %p372 = scmp.lt.s32.totalorder %s26, 1
          %s373 = scalar_select %p372, %s26, 1
          %s374 = smul.addr %s373, 4
          %s375 = smul.addr %s374, 4
          %s376 = scalar_lea.vmem %s4, %s375
        $region56: #{tpu_custom_call.1} parent=35 // pred_fallthru
          _
      $region36: #{tpu_custom_call.1} parent=5 // pred_fallthru
        _
      %p377 = scmp.le.s32.totalorder 1, %s19
      %p378 = scmp.lt.s32.totalorder %s19, 3
      %p379 = pnand %p377, %p378
      %p380 = pneg %p379
      // Predicated region
      $region57: #{tpu_custom_call.1} parent=5 // pred_check
        _
      $region58: #{tpu_custom_call.1} parent=5 // pred_check_branch
        %382 = sbr.rel (%p379) target = $region60
      $region59: #{tpu_custom_call.1} parent=5 // pred_region
        %s383 = ssub.s32 %s19, 1
        %p384 = scmp.lt.s32.totalorder %s28, 1
        %s385 = scalar_select %p384, %s28, 1
        %p386 = scmp.lt.s32.totalorder %s29, 0
        %s387 = scalar_select %p386, %s29, 0
        %s388 = sadd.s32 %s387, %s385
        %s389 = smul.addr %s388, 4
        %s390 = scalar_lea.vmem %s0, %s389
        %p391 = pneg %p59
        %p392 = pneg %p56
        %p393 = scmp.lt.s32.totalorder %s28, 1
        %s394 = scalar_select %p393, %s28, 1
        %s395 = smul.addr %s394, 2
        %s396 = smul.addr %s395, 8
        %s397 = scalar_lea.vmem %s1, %s396
        %p398 = pneg %p85
        %p399 = pneg %p82
        %p400 = scmp.lt.s32.totalorder %s28, 1
        %s401 = scalar_select %p400, %s28, 1
        %s402 = smul.addr %s401, 2
        %s403 = smul.addr %s402, 8
        %s404 = scalar_lea.vmem %s2, %s403
        %p405 = pneg %p111
        %p406 = pneg %p108
        %p407 = scmp.lt.s32.totalorder %s28, 1
        %s408 = scalar_select %p407, %s28, 1
        %p409 = scmp.lt.s32.totalorder %s29, 0
        %s410 = scalar_select %p409, %s29, 0
        %s411 = smul.addr %s408, 2
        %s412 = sadd.s32 %s410, %s411
        %s413 = smul.addr %s412, 4
        %s414 = scalar_lea.vmem %s3, %s413
        %p415 = pneg %p139
        %p416 = pneg %p136
        %p417 = scmp.lt.s32.totalorder %s28, 1
        %s418 = scalar_select %p417, %s28, 1
        %s419 = smul.addr %s418, 4
        %s420 = smul.addr %s419, 4
        %s421 = scalar_lea.vmem %s4, %s420
        %p422 = pneg %p165
        %p423 = pneg %p162
        %p424 = pneg %p186
        %p425 = pneg %p183
        %p426 = pneg %p207
        %p427 = pneg %p204
        %p428 = pneg %p228
        %p429 = pneg %p225
        %p430 = pneg %p249
        %p431 = pneg %p246
        %p432 = pneg %p270
        %p433 = pneg %p267
        %p434 = pneg %p298
        %p435 = pneg %p295
        %s436 = sand.u32 %s285, 1
        %s437 = scalar_lea.sflag [#allocation3], %s436
        %s438 = sand.u32 %s285, 1
        %s439 = smul.addr %s438, 32
        %s440 = scalar_lea.vmem [#allocation2], %s439
        %p441 = scmp.lt.s32.totalorder %s28, 1
        %s442 = scalar_select %p441, %s28, 1
        %p443 = scmp.lt.s32.totalorder %s29, 0
        %s444 = scalar_select %p443, %s29, 0
        %s445 = sadd.s32 %s444, %s442
        %s446 = smul.addr %s445, 4
        %s447 = scalar_lea.vmem %s0, %s446
        %p448 = scmp.lt.s32.totalorder %s28, 1
        %s449 = scalar_select %p448, %s28, 1
        %s450 = smul.addr %s449, 2
        %s451 = smul.addr %s450, 8
        %s452 = scalar_lea.vmem %s1, %s451
        %p453 = scmp.lt.s32.totalorder %s28, 1
        %s454 = scalar_select %p453, %s28, 1
        %s455 = smul.addr %s454, 2
        %s456 = smul.addr %s455, 8
        %s457 = scalar_lea.vmem %s2, %s456
        %p458 = scmp.lt.s32.totalorder %s28, 1
        %s459 = scalar_select %p458, %s28, 1
        %p460 = scmp.lt.s32.totalorder %s29, 0
        %s461 = scalar_select %p460, %s29, 0
        %s462 = smul.addr %s459, 2
        %s463 = sadd.s32 %s461, %s462
        %s464 = smul.addr %s463, 4
        %s465 = scalar_lea.vmem %s3, %s464
        %p466 = scmp.lt.s32.totalorder %s28, 1
        %s467 = scalar_select %p466, %s28, 1
        %s468 = smul.addr %s467, 4
        %s469 = smul.addr %s468, 4
        %s470 = scalar_lea.vmem %s4, %s469
        %v472 = vld [vmem:[%s447] sm:$0x7]
        %v473 = vld [vmem:[%s452] sm:$0xff]
        %v474 = vld [vmem:[%s452 + $0x8] sm:$0xff]
        %v475 = vld [vmem:[%s457] sm:$0xff]
        %v476 = vld [vmem:[%s457 + $0x8] sm:$0xff]
        %v477 = vld [vmem:[%s465] sm:$0xf]
        %v478 = vld [vmem:[%s465 + $0x4] sm:$0xf]
        %v479 = vld [vmem:[%s470] sm:$0xf]
        %v480 = vld [vmem:[%s470 + $0x4] sm:$0xf]
        %v481 = vld [vmem:[%s470 + $0x8] sm:$0xf]
        %v482 = vld [vmem:[%s470 + $0xc] sm:$0xf]
        %vm483 = vcmask 23552
        %v485 = vsel %vm483, %v473, 0
        %v488 = vsel %vm483, %v474, 0
        %vm490 = vcmask 1042432
        %v492 = vsel %vm490, %v472, 0
        %494 = vmatprep.subr.mxu0 0.0
        %495 = vmatpush1.msra.mxu0 %v492
        %496 = vmatprep.subr.mxu0 0.0
        %497 = vmatpush1.msra.mxu0 0.0
        %498 = vmatprep.subr.mxu0 0.0
        %499 = vmatpush1.msra.mxu0 0.0
        %500 = vmatprep.subr.mxu0 0.0
        %501 = vmatpush1.msra.mxu0 0.0
        %502 = vmatprep.subr.mxu0 0.0
        %503 = vmatpush1.msra.mxu0 0.0
        %504 = vmatprep.subr.mxu0 0.0
        %505 = vmatpush1.msra.mxu0 0.0
        %506 = vmatprep.subr.mxu0 0.0
        %507 = vmatpush1.msra.mxu0 0.0
        %508 = vmatprep.subr.mxu0 0.0
        %509 = vmatpush1.msra.mxu0 0.0
        %510 = vmatprep.subr.mxu0 0.0
        %511 = vmatpush1.msra.mxu0 0.0
        %512 = vmatprep.subr.mxu0 0.0
        %513 = vmatpush1.msra.mxu0 0.0
        %514 = vmatprep.subr.mxu0 0.0
        %515 = vmatpush1.msra.mxu0 0.0
        %516 = vmatprep.subr.mxu0 0.0
        %517 = vmatpush1.msra.mxu0 0.0
        %518 = vmatprep.subr.mxu0 0.0
        %519 = vmatpush1.msra.mxu0 0.0
        %520 = vmatprep.subr.mxu0 0.0
        %521 = vmatpush1.msra.mxu0 0.0
        %522 = vmatprep.subr.mxu0 0.0
        %523 = vmatpush1.msra.mxu0 0.0
        %524 = vmatprep.subr.mxu0 0.0
        %525 = vmatpush1.msra.mxu0 0.0
        %526 = vmatprep.subr.mxu0 0.0
        %527 = vmatpush1.msra.mxu0 0.0
        %528 = vmatprep.subr.mxu0 0.0
        %529 = vmatpush1.msra.mxu0 0.0
        %530 = vmatprep.subr.mxu0 0.0
        %531 = vmatpush1.msra.mxu0 0.0
        %532 = vmatprep.subr.mxu0 0.0
        %533 = vmatpush1.msra.mxu0 0.0
        %534 = vmatprep.subr.mxu0 0.0
        %535 = vmatpush1.msra.mxu0 0.0
        %536 = vmatprep.subr.mxu0 0.0
        %537 = vmatpush1.msra.mxu0 0.0
        %538 = vmatprep.subr.mxu0 0.0
        %539 = vmatpush1.msra.mxu0 0.0
        %540 = vmatprep.subr.mxu0 0.0
        %541 = vmatpush1.msra.mxu0 0.0
        %542 = vmatprep.subr.mxu0 0.0
        %543 = vmatpush1.msra.mxu0 0.0
        %544 = vmatprep.subr.mxu0 0.0
        %545 = vmatpush1.msra.mxu0 0.0
        %546 = vmatprep.subr.mxu0 0.0
        %547 = vmatpush1.msra.mxu0 0.0
        %548 = vmatprep.subr.mxu0 0.0
        %549 = vmatpush1.msra.mxu0 0.0
        %550 = vmatprep.subr.mxu0 0.0
        %551 = vmatpush1.msra.mxu0 0.0
        %552 = vmatprep.subr.mxu0 0.0
        %553 = vmatpush1.msra.mxu0 0.0
        %554 = vmatprep.subr.mxu0 0.0
        %555 = vmatpush1.msra.mxu0 0.0
        %556 = vmatprep.subr.mxu0 0.0
        %557 = vmatpush1.msra.mxu0 0.0
        %558 = vmatprep.mubr.f32.mxu0 0.0
        %559 = vmatmul.mubr.f32.gmra.mrb[0].mxu0 %v485
        %v560 = vpop.f32.mrb[0].mxu0
        %v561 = vadd.f32 0.0, %v560
        %v562 = vpop.f32.mrb[0].mxu0
        %563 = vmatprep.mubr.f32.mxu0 0.0
        %564 = vmatmul.mubr.f32.gmra.mrb[0].mxu0 %v488
        %v565 = vpop.f32.mrb[0].mxu0
        %v566 = vadd.f32 0.0, %v565
        %v567 = vpop.f32.mrb[0].mxu0
        %568 = vdwg.mxu0
        %v569 = vmul.f32 %v472, %v472
        %v570 = vsel %vm490, %v569, 0.0
        %v571 = vrot.slane %v570, 4
        %v572 = vadd.f32 %v570, %v571
        %v573 = vrot.slane %v572, 2
        %v574 = vadd.f32 %v572, %v573
        %v575 = vrot.slane %v574, 1
        %v576 = vadd.f32 %v574, %v575
        %578 = vset.pattern.permute.xlu0 0
        %579 = vperm.xlu0 %578, %v475
        %v580 = vpop.permute.xlu0 %579
        %583 = vset.pattern.permute.xlu0 0
        %584 = vperm.xlu0 %583, %v476
        %v585 = vpop.permute.xlu0 %584
        %v587 = vadd.f32 %v580, %v576
        %v588 = vadd.f32 %v585, %v576
        %v589 = vadd.f32 %v561, %v561
        %v590 = vadd.f32 %v566, %v566
        %v591 = vsub.f32 %v587, %v589
        %v592 = vsub.f32 %v588, %v590
        %v593 = vmax.f32 %v591, 0.0
        %v594 = vmax.f32 %v592, 0.0
        %v595 = vlaneseq
        %v596 = vshrl.u32 %v595, 7
        %v597 = vadd.s32 %v596, 8
        %v600 = vand.u32 %v593, 4294967280
        %v601 = vand.u32 %v594, 4294967280
        %v602 = vor.u32 %v600, %v596
        %v603 = vor.u32 %v601, %v597
        %v606 = vmin.f32 %v602, %v603
        %v607 = vrot.slane %v606, 4
        %v608 = vmin.f32 %v606, %v607
        %v609 = vrot.slane %v608, 2
        %v610 = vmin.f32 %v608, %v609
        %v611 = vrot.slane %v610, 1
        %v612 = vmin.f32 %v610, %v611
        %vm613 = vcmp.eq.f32.partialorder %v602, %v612
        %vm614 = vcmp.eq.f32.partialorder %v603, %v612
        %v616 = vand.u32 %v612, 4294967280
        %v618 = vadd.f32 %v616, 1e-08
        %v619 = vrcp.pop %v618
        %v620 = vsel %vm613, %v619, 0.0
        %v621 = vsel %vm614, %v619, 0.0
        %v622 = vadd.f32 %v620, 0.0
        %v623 = vadd.f32 %v621, 0.0
        %v624 = vadd.f32 %v619, 0.0
        %v625 = vsel %vm613, 3.4e+38, %v602
        %v626 = vsel %vm614, 3.4e+38, %v603
        %v627 = vmin.f32 %v625, %v626
        %v628 = vrot.slane %v627, 4
        %v629 = vmin.f32 %v627, %v628
        %v630 = vrot.slane %v629, 2
        %v631 = vmin.f32 %v629, %v630
        %v632 = vrot.slane %v631, 1
        %v633 = vmin.f32 %v631, %v632
        %vm634 = vcmp.eq.f32.partialorder %v625, %v633
        %vm635 = vcmp.eq.f32.partialorder %v626, %v633
        %v637 = vand.u32 %v633, 4294967280
        %v639 = vadd.f32 %v637, 1e-08
        %v640 = vrcp.pop %v639
        %v641 = vsel %vm634, %v640, 0.0
        %v642 = vsel %vm635, %v640, 0.0
        %v643 = vadd.f32 %v622, %v641
        %v644 = vadd.f32 %v623, %v642
        %v645 = vadd.f32 %v624, %v640
        %v646 = vsel %vm634, 3.4e+38, %v625
        %v647 = vsel %vm635, 3.4e+38, %v626
        %v648 = vmin.f32 %v646, %v647
        %v649 = vrot.slane %v648, 4
        %v650 = vmin.f32 %v648, %v649
        %v651 = vrot.slane %v650, 2
        %v652 = vmin.f32 %v650, %v651
        %v653 = vrot.slane %v652, 1
        %v654 = vmin.f32 %v652, %v653
        %vm655 = vcmp.eq.f32.partialorder %v646, %v654
        %vm656 = vcmp.eq.f32.partialorder %v647, %v654
        %v658 = vand.u32 %v654, 4294967280
        %v660 = vadd.f32 %v658, 1e-08
        %v661 = vrcp.pop %v660
        %v662 = vsel %vm655, %v661, 0.0
        %v663 = vsel %vm656, %v661, 0.0
        %v664 = vadd.f32 %v643, %v662
        %v665 = vadd.f32 %v644, %v663
        %v666 = vadd.f32 %v645, %v661
        %v667 = vrcp.pop %v666
        %v668 = vmul.f32 %v664, %v667
        %v669 = vmul.f32 %v665, %v667
        %v670 = vpack.c.bf16 %v669, %v668
        %v675 = vunpack.c.l.b16 %v479
        %v676 = vunpack.c.l.b16 %v480
        %v677 = vunpack.c.l.b16 %v481
        %v678 = vunpack.c.l.b16 %v482
        %v679 = vpack.c.b16 %v676, %v675
        %v680 = vpack.c.b16 %v678, %v677
        %vm681 = vcmask 130048
        %v683 = vsel %vm681, %v679, 0
        %v686 = vsel %vm681, %v680, 0
        %688 = vmatprep.subr.bf16.mxu0 0
        %689 = vmatpush1.bf16.msra.mxu0 %v670
        %690 = vmatprep.subr.bf16.mxu0 0
        %691 = vmatpush1.bf16.msra.mxu0 0
        %692 = vmatprep.subr.bf16.mxu0 0
        %693 = vmatpush1.bf16.msra.mxu0 0
        %694 = vmatprep.subr.bf16.mxu0 0
        %695 = vmatpush1.bf16.msra.mxu0 0
        %696 = vmatprep.subr.bf16.mxu0 0
        %697 = vmatpush1.bf16.msra.mxu0 0
        %698 = vmatprep.subr.bf16.mxu0 0
        %699 = vmatpush1.bf16.msra.mxu0 0
        %700 = vmatprep.subr.bf16.mxu0 0
        %701 = vmatpush1.bf16.msra.mxu0 0
        %702 = vmatprep.subr.bf16.mxu0 0
        %703 = vmatpush1.bf16.msra.mxu0 0
        %704 = vmatprep.subr.bf16.mxu0 0
        %705 = vmatpush1.bf16.msra.mxu0 0
        %706 = vmatprep.subr.bf16.mxu0 0
        %707 = vmatpush1.bf16.msra.mxu0 0
        %708 = vmatprep.subr.bf16.mxu0 0
        %709 = vmatpush1.bf16.msra.mxu0 0
        %710 = vmatprep.subr.bf16.mxu0 0
        %711 = vmatpush1.bf16.msra.mxu0 0
        %712 = vmatprep.subr.bf16.mxu0 0
        %713 = vmatpush1.bf16.msra.mxu0 0
        %714 = vmatprep.subr.bf16.mxu0 0
        %715 = vmatpush1.bf16.msra.mxu0 0
        %716 = vmatprep.subr.bf16.mxu0 0
        %717 = vmatpush1.bf16.msra.mxu0 0
        %718 = vmatprep.subr.bf16.mxu0 0
        %719 = vmatpush1.bf16.msra.mxu0 0
        %720 = vmatprep.mubr.bf16.mxu0 0
        %721 = vmatmul.mubr.bf16.gmra.mrb[0].mxu0 %v683
        %v722 = vpop.f32.mrb[0].mxu0
        %v723 = vadd.f32 0.0, %v722
        %v724 = vpop.f32.mrb[0].mxu0
        %v725 = vpop.f32.mrb[0].mxu0
        %v726 = vadd.f32 0.0, %v725
        %v727 = vpop.f32.mrb[0].mxu0
        %728 = vmatprep.mubr.bf16.mxu0 0
        %729 = vmatmul.mubr.bf16.gmra.mrb[0].mxu0 %v686
        %v730 = vpop.f32.mrb[0].mxu0
        %v731 = vadd.f32 0.0, %v730
        %v732 = vpop.f32.mrb[0].mxu0
        %v733 = vpop.f32.mrb[0].mxu0
        %v734 = vadd.f32 0.0, %v733
        %v735 = vpop.f32.mrb[0].mxu0
        %736 = vdwg.mxu0
        %v737 = vld [vmem:[%s5] sm:$0xf]
        %v738 = vld [vmem:[%s5 + $0x4] sm:$0xf]
        %v739 = vld [vmem:[%s5 + $0x8] sm:$0xf]
        %v740 = vld [vmem:[%s5 + $0xc] sm:$0xf]
        %v741 = vld [vmem:[%s6] sm:$0xf]
        %v742 = vld [vmem:[%s6 + $0x4] sm:$0xf]
        %v743 = vld [vmem:[%s6 + $0x8] sm:$0xf]
        %v744 = vld [vmem:[%s6 + $0xc] sm:$0xf]
        %v745 = vld [vmem:[%s7] sm:$0xff]
        %v746 = vld [vmem:[%s7 + $0x8] sm:$0xff]
        %v747 = vld [vmem:[%s7 + $0x10] sm:$0xff]
        %v748 = vld [vmem:[%s7 + $0x18] sm:$0xff]
        %v749 = vpack.c.bf16 %v726, %v723
        %v750 = vpack.c.bf16 %v734, %v731
        %v755 = vunpack.c.l.b16 %v741
        %v756 = vunpack.c.l.b16 %v742
        %v757 = vunpack.c.l.b16 %v743
        %v758 = vunpack.c.l.b16 %v744
        %v759 = vpack.c.b16 %v756, %v755
        %v760 = vpack.c.b16 %v758, %v757
        %vm761 = vcmask 261120
        %v763 = vsel %vm761, %v759, 0
        %v766 = vsel %vm761, %v760, 0
        %768 = vmatprep.subr.bf16.mxu0 0
        %769 = vmatpush1.bf16.msra.mxu0 %v749
        %770 = vmatprep.subr.bf16.mxu0 0
        %771 = vmatpush1.bf16.msra.mxu0 %v750
        %772 = vmatprep.subr.bf16.mxu0 0
        %773 = vmatpush1.bf16.msra.mxu0 0
        %774 = vmatprep.subr.bf16.mxu0 0
        %775 = vmatpush1.bf16.msra.mxu0 0
        %776 = vmatprep.subr.bf16.mxu0 0
        %777 = vmatpush1.bf16.msra.mxu0 0
        %778 = vmatprep.subr.bf16.mxu0 0
        %779 = vmatpush1.bf16.msra.mxu0 0
        %780 = vmatprep.subr.bf16.mxu0 0
        %781 = vmatpush1.bf16.msra.mxu0 0
        %782 = vmatprep.subr.bf16.mxu0 0
        %783 = vmatpush1.bf16.msra.mxu0 0
        %784 = vmatprep.subr.bf16.mxu0 0
        %785 = vmatpush1.bf16.msra.mxu0 0
        %786 = vmatprep.subr.bf16.mxu0 0
        %787 = vmatpush1.bf16.msra.mxu0 0
        %788 = vmatprep.subr.bf16.mxu0 0
        %789 = vmatpush1.bf16.msra.mxu0 0
        %790 = vmatprep.subr.bf16.mxu0 0
        %791 = vmatpush1.bf16.msra.mxu0 0
        %792 = vmatprep.subr.bf16.mxu0 0
        %793 = vmatpush1.bf16.msra.mxu0 0
        %794 = vmatprep.subr.bf16.mxu0 0
        %795 = vmatpush1.bf16.msra.mxu0 0
        %796 = vmatprep.subr.bf16.mxu0 0
        %797 = vmatpush1.bf16.msra.mxu0 0
        %798 = vmatprep.subr.bf16.mxu0 0
        %799 = vmatpush1.bf16.msra.mxu0 0
        %800 = vmatprep.mubr.bf16.mxu0 0
        %801 = vmatmul.mubr.bf16.gmra.mrb[0].mxu0 %v763
        %v802 = vpop.f32.mrb[0].mxu0
        %v803 = vadd.f32 0.0, %v802
        %v804 = vpop.f32.mrb[0].mxu0
        %v805 = vpop.f32.mrb[0].mxu0
        %v806 = vadd.f32 0.0, %v805
        %v807 = vpop.f32.mrb[0].mxu0
        %808 = vmatprep.mubr.bf16.mxu0 0
        %809 = vmatmul.mubr.bf16.gmra.mrb[0].mxu0 %v766
        %v810 = vpop.f32.mrb[0].mxu0
        %v811 = vadd.f32 0.0, %v810
        %v812 = vpop.f32.mrb[0].mxu0
        %v813 = vpop.f32.mrb[0].mxu0
        %v814 = vadd.f32 0.0, %v813
        %v815 = vpop.f32.mrb[0].mxu0
        %816 = vdwg.mxu0
        %v821 = vunpack.c.l.b16 %v737
        %v822 = vunpack.c.l.b16 %v738
        %v823 = vunpack.c.l.b16 %v739
        %v824 = vunpack.c.l.b16 %v740
        %v825 = vpack.c.b16 %v822, %v821
        %v826 = vpack.c.b16 %v824, %v823
        %v829 = vunpack.c.l.b16 %v477
        %v830 = vunpack.c.l.b16 %v478
        %v831 = vpack.c.b16 %v830, %v829
        %v834 = vsel %vm681, %v825, 0
        %v837 = vsel %vm681, %v826, 0
        %839 = vmatprep.subr.bf16.mxu0 0
        %840 = vmatpush1.bf16.msra.mxu0 %v831
        %841 = vmatprep.subr.bf16.mxu0 0
        %842 = vmatpush1.bf16.msra.mxu0 0
        %843 = vmatprep.subr.bf16.mxu0 0
        %844 = vmatpush1.bf16.msra.mxu0 0
        %845 = vmatprep.subr.bf16.mxu0 0
        %846 = vmatpush1.bf16.msra.mxu0 0
        %847 = vmatprep.subr.bf16.mxu0 0
        %848 = vmatpush1.bf16.msra.mxu0 0
        %849 = vmatprep.subr.bf16.mxu0 0
        %850 = vmatpush1.bf16.msra.mxu0 0
        %851 = vmatprep.subr.bf16.mxu0 0
        %852 = vmatpush1.bf16.msra.mxu0 0
        %853 = vmatprep.subr.bf16.mxu0 0
        %854 = vmatpush1.bf16.msra.mxu0 0
        %855 = vmatprep.subr.bf16.mxu0 0
        %856 = vmatpush1.bf16.msra.mxu0 0
        %857 = vmatprep.subr.bf16.mxu0 0
        %858 = vmatpush1.bf16.msra.mxu0 0
        %859 = vmatprep.subr.bf16.mxu0 0
        %860 = vmatpush1.bf16.msra.mxu0 0
        %861 = vmatprep.subr.bf16.mxu0 0
        %862 = vmatpush1.bf16.msra.mxu0 0
        %863 = vmatprep.subr.bf16.mxu0 0
        %864 = vmatpush1.bf16.msra.mxu0 0
        %865 = vmatprep.subr.bf16.mxu0 0
        %866 = vmatpush1.bf16.msra.mxu0 0
        %867 = vmatprep.subr.bf16.mxu0 0
        %868 = vmatpush1.bf16.msra.mxu0 0
        %869 = vmatprep.subr.bf16.mxu0 0
        %870 = vmatpush1.bf16.msra.mxu0 0
        %871 = vmatprep.mubr.bf16.mxu0 0
        %872 = vmatmul.mubr.bf16.gmra.mrb[0].mxu0 %v834
        %v873 = vpop.f32.mrb[0].mxu0
        %v874 = vadd.f32 %v803, %v873
        %v875 = vpop.f32.mrb[0].mxu0
        %v876 = vpop.f32.mrb[0].mxu0
        %v877 = vadd.f32 %v806, %v876
        %v878 = vpop.f32.mrb[0].mxu0
        %879 = vmatprep.mubr.bf16.mxu0 0
        %880 = vmatmul.mubr.bf16.gmra.mrb[0].mxu0 %v837
        %v881 = vpop.f32.mrb[0].mxu0
        %v882 = vadd.f32 %v811, %v881
        %v883 = vpop.f32.mrb[0].mxu0
        %v884 = vpop.f32.mrb[0].mxu0
        %v885 = vadd.f32 %v814, %v884
        %v886 = vpop.f32.mrb[0].mxu0
        %887 = vdwg.mxu0
        %889 = vset.pattern.permute.xlu0 0
        %890 = vperm.xlu0 %889, %v745
        %v891 = vpop.permute.xlu0 %890
        %894 = vset.pattern.permute.xlu0 0
        %895 = vperm.xlu0 %894, %v746
        %v896 = vpop.permute.xlu0 %895
        %899 = vset.pattern.permute.xlu0 0
        %900 = vperm.xlu0 %899, %v747
        %v901 = vpop.permute.xlu0 %900
        %904 = vset.pattern.permute.xlu0 0
        %905 = vperm.xlu0 %904, %v748
        %v906 = vpop.permute.xlu0 %905
        %v908 = vadd.f32 %v874, %v891
        %v909 = vadd.f32 %v877, %v896
        %v910 = vadd.f32 %v882, %v901
        %v911 = vadd.f32 %v885, %v906
        %v912 = vmax.f32 %v908, 0.0
        %v913 = vmax.f32 %v909, 0.0
        %v914 = vmax.f32 %v910, 0.0
        %v915 = vmax.f32 %v911, 0.0
        %v916 = vld [vmem:[%s8] sm:$0xf]
        %v917 = vld [vmem:[%s8 + $0x4] sm:$0xf]
        %v918 = vld [vmem:[%s8 + $0x8] sm:$0xf]
        %v919 = vld [vmem:[%s8 + $0xc] sm:$0xf]
        %v920 = vld [vmem:[%s9] sm:$0xff]
        %v921 = vld [vmem:[%s9 + $0x8] sm:$0xff]
        %v922 = vld [vmem:[%s9 + $0x10] sm:$0xff]
        %v923 = vld [vmem:[%s9 + $0x18] sm:$0xff]
        %v924 = vpack.c.bf16 %v913, %v912
        %v925 = vpack.c.bf16 %v915, %v914
        %927 = vset.pattern.permute.xlu0 0
        %928 = vperm.xlu0 %927, %v920
        %v929 = vpop.permute.xlu0 %928
        %932 = vset.pattern.permute.xlu0 0
        %933 = vperm.xlu0 %932, %v921
        %v934 = vpop.permute.xlu0 %933
        %937 = vset.pattern.permute.xlu0 0
        %938 = vperm.xlu0 %937, %v922
        %v939 = vpop.permute.xlu0 %938
        %942 = vset.pattern.permute.xlu0 0
        %943 = vperm.xlu0 %942, %v923
        %v944 = vpop.permute.xlu0 %943
        %v950 = vunpack.c.l.b16 %v916
        %v951 = vunpack.c.l.b16 %v917
        %v952 = vunpack.c.l.b16 %v918
        %v953 = vunpack.c.l.b16 %v919
        %v954 = vpack.c.b16 %v951, %v950
        %v955 = vpack.c.b16 %v953, %v952
        %v957 = vsel %vm761, %v954, 0
        %v960 = vsel %vm761, %v955, 0
        %962 = vmatprep.subr.bf16.mxu0 0
        %963 = vmatpush1.bf16.msra.mxu0 %v924
        %964 = vmatprep.subr.bf16.mxu0 0
        %965 = vmatpush1.bf16.msra.mxu0 %v925
        %966 = vmatprep.subr.bf16.mxu0 0
        %967 = vmatpush1.bf16.msra.mxu0 0
        %968 = vmatprep.subr.bf16.mxu0 0
        %969 = vmatpush1.bf16.msra.mxu0 0
        %970 = vmatprep.subr.bf16.mxu0 0
        %971 = vmatpush1.bf16.msra.mxu0 0
        %972 = vmatprep.subr.bf16.mxu0 0
        %973 = vmatpush1.bf16.msra.mxu0 0
        %974 = vmatprep.subr.bf16.mxu0 0
        %975 = vmatpush1.bf16.msra.mxu0 0
        %976 = vmatprep.subr.bf16.mxu0 0
        %977 = vmatpush1.bf16.msra.mxu0 0
        %978 = vmatprep.subr.bf16.mxu0 0
        %979 = vmatpush1.bf16.msra.mxu0 0
        %980 = vmatprep.subr.bf16.mxu0 0
        %981 = vmatpush1.bf16.msra.mxu0 0
        %982 = vmatprep.subr.bf16.mxu0 0
        %983 = vmatpush1.bf16.msra.mxu0 0
        %984 = vmatprep.subr.bf16.mxu0 0
        %985 = vmatpush1.bf16.msra.mxu0 0
        %986 = vmatprep.subr.bf16.mxu0 0
        %987 = vmatpush1.bf16.msra.mxu0 0
        %988 = vmatprep.subr.bf16.mxu0 0
        %989 = vmatpush1.bf16.msra.mxu0 0
        %990 = vmatprep.subr.bf16.mxu0 0
        %991 = vmatpush1.bf16.msra.mxu0 0
        %992 = vmatprep.subr.bf16.mxu0 0
        %993 = vmatpush1.bf16.msra.mxu0 0
        %994 = vmatprep.mubr.bf16.mxu0 0
        %995 = vmatmul.mubr.bf16.gmra.mrb[0].mxu0 %v957
        %v996 = vpop.f32.mrb[0].mxu0
        %v997 = vadd.f32 %v929, %v996
        %v998 = vpop.f32.mrb[0].mxu0
        %v999 = vpop.f32.mrb[0].mxu0
        %v1000 = vadd.f32 %v934, %v999
        %v1001 = vpop.f32.mrb[0].mxu0
        %1002 = vmatprep.mubr.bf16.mxu0 0
        %1003 = vmatmul.mubr.bf16.gmra.mrb[0].mxu0 %v960
        %v1004 = vpop.f32.mrb[0].mxu0
        %v1005 = vadd.f32 %v939, %v1004
        %v1006 = vpop.f32.mrb[0].mxu0
        %v1007 = vpop.f32.mrb[0].mxu0
        %v1008 = vadd.f32 %v944, %v1007
        %v1009 = vpop.f32.mrb[0].mxu0
        %1010 = vdwg.mxu0
        %v1011 = vmax.f32 %v997, 0.0
        %v1012 = vmax.f32 %v1000, 0.0
        %v1013 = vmax.f32 %v1005, 0.0
        %v1014 = vmax.f32 %v1008, 0.0
        %1015 = vst [vmem:[%s440] sm:$0xff] %v1011
        %1016 = vst [vmem:[%s440 + $0x8] sm:$0xff] %v1012
        %1017 = vst [vmem:[%s440 + $0x10] sm:$0xff] %v1013
        %1018 = vst [vmem:[%s440 + $0x18] sm:$0xff] %v1014
        %s1019 = sand.u32 %s285, 1
        %s1020 = scalar_lea.sflag [#allocation3], %s1019
        %s1021 = sand.u32 %s285, 1
        %s1022 = smul.addr %s1021, 32
        %s1023 = scalar_lea.vmem [#allocation2], %s1022
        // Predicated region
        $region61: #{tpu_custom_call.1} parent=59 // pred_check
          %p1024 = pneg %p295
        $region62: #{tpu_custom_call.1} parent=59 // pred_check_branch
          %1026 = sbr.rel (%p1024) target = $region64
        $region63: #{tpu_custom_call.1} parent=59 // pred_region
          %s1028 = ssub.s32 512, 512
          %1029 = vsyncadd %s1020, %s1028
          %s1030 = smul.addr %s28, 4
          %s1031 = sadd.s32 %s29, %s1030
          %s1032 = smul.addr %s1031, 128
          %s1033 = scalar_lea.hbm %s10, %s1032
          %s1034 = sshll.u32 %s1023, 4
          %s1035 = int_to_ptr.vmem [resolvable:$true] %s1034
          %1040 = dma.vmem_to_hbm [thread:$0]  %s1035, 512, %s1033, %s1020, 128, 128, 8
        $region64: #{tpu_custom_call.1} parent=59 // pred_fallthru
          _
      $region60: #{tpu_custom_call.1} parent=5 // pred_fallthru
        _
      %p1041 = scmp.le.s32.totalorder 2, %s19
      // Predicated region
      $region65: #{tpu_custom_call.1} parent=5 // pred_check
        %p1042 = pneg %p1041
      $region66: #{tpu_custom_call.1} parent=5 // pred_check_branch
        %1044 = sbr.rel (%p1042) target = $region68
      $region67: #{tpu_custom_call.1} parent=5 // pred_region
        %s1045 = ssub.s32 %s19, 2
        // Predicated region
        $region69: #{tpu_custom_call.1} parent=67 // pred_check
          %p1046 = pneg %p301
        $region70: #{tpu_custom_call.1} parent=67 // pred_check_branch
          %1048 = sbr.rel (%p1046) target = $region72
        $region71: #{tpu_custom_call.1} parent=67 // pred_region
          %s1049 = sand.u32 %s286, 1
          %s1050 = scalar_lea.sflag [#allocation3], %s1049
          %s1051 = sand.u32 %s286, 1
          %s1052 = smul.addr %s1051, 32
          %s1053 = scalar_lea.vmem [#allocation2], %s1052
          %1054 = dma.done %s1050, 512
        $region72: #{tpu_custom_call.1} parent=67 // pred_fallthru
          _
      $region68: #{tpu_custom_call.1} parent=5 // pred_fallthru
        _
    $region6: #{tpu_custom_call.1} parent=1 // loop_footer
      %s23 = sadd.s32 1, %s19
    $region7: #{tpu_custom_call.1} parent=1 // loop_footer_branch
      %18 = sbr.rel target = $region3
    $region8: #{tpu_custom_call.1} parent=1 // loop_exit
      _
    %1055 = vsyncpa [#allocation3], 1
    %s1056 = scalar_lea.sflag [#allocation3], 1
    %1057 = vsyncpa %s1056, 1

</llo_original>
